<compile_context>
chip_gen: v7x
topology: tpu7x:2x2x1
jax: 0.10.0
libtpu: 0.0.40
codegen_flags: <defaults>
</compile_context>

<pallas_src>
import math

import jax
import jax.numpy as jnp
from jax.experimental import pallas as pl
from jax.experimental.pallas import tpu as pltpu

_LANE = 128  # TPU lane width


def _select00_kernel(x_ref, o_ref):
    # x_ref: (TILE, LW) block of the flattened (B*C, H*W) input. Only the
    #        first LW (<=128) columns of each plane were DMA'd; column 0 is
    #        the (..., 0, 0) element of each plane.
    # o_ref: (TILE, 1) block of the output column.
    o_ref[...] = x_ref[:, 0:1]


def _round_up(x: int, m: int) -> int:
    return ((x + m - 1) // m) * m


def _sublane_multiple(dtype) -> int:
    # 32-bit -> 8 rows, 16-bit -> 16, 8-bit -> 32 (sub-32-bit dtypes pack
    # along sublanes), so non-full-extent tiles stay layout-legal.
    itemsize = jnp.dtype(dtype).itemsize
    return 8 * max(1, 4 // max(itemsize, 1))


def _is_v7x() -> bool:
    try:
        kind = jax.devices()[0].device_kind.lower().replace(" ", "")
        return "v7" in kind or "tpu7" in kind
    except Exception:
        return False


def _pick_tile(bc: int, lw: int, dtype) -> int:
    """Rows per grid step.

    Large enough to amortize the ~0.35 us fixed per-step overhead (target
    ~4 MiB blocks, ~8 MiB on v7x), small enough to keep >= 2 grid steps so
    the parallel grid axis can use both v7x TensorCores.
    """
    sub = _sublane_multiple(dtype)
    itemsize = jnp.dtype(dtype).itemsize
    target_bytes = (8 << 20) if _is_v7x() else (4 << 20)
    max_tile = max(sub, _round_up(target_bytes // max(lw * itemsize, 1), sub))
    if bc > max_tile:
        return max_tile
    # Try to keep >= 2 grid steps; fall back to full extent for tiny bc.
    half = _round_up((bc + 1) // 2, sub)
    return bc if half >= bc else half


def tempnn_forward(x: jax.Array, *, tile_bc: int | None = None) -> jax.Array:
    """Equivalent of tempnn().forward(x): x[..., 0, 0]."""
    assert x.ndim >= 2, "forward indexes the last two axes"
    lead_shape = x.shape[:-2]
    hw = x.shape[-2] * x.shape[-1]
    bc = math.prod(lead_shape) if lead_shape else 1

    # Metadata-only reshape: (B, C, H, W) -> (B*C, H*W); no HBM copy.
    x2d = x.reshape(bc, hw)

    # Fetch only the first <=128 columns of each plane; column 0 is the
    # wanted element. Block dims are either full-extent or (8,128)-aligned.
    lw = hw if hw < _LANE else _LANE

    if tile_bc is None:
        tile = _pick_tile(bc, lw, x.dtype)
    else:
        tile = min(_round_up(tile_bc, _sublane_multiple(x.dtype)), bc)
    grid = (pl.cdiv(bc, tile),)

    itemsize = jnp.dtype(x.dtype).itemsize
    cost = pl.CostEstimate(
        flops=0,
        transcendentals=0,
        bytes_accessed=bc * itemsize * (lw + 1),  # restricted read + tiny write
    )

    out2d = pl.pallas_call(
        _select00_kernel,
        out_shape=jax.ShapeDtypeStruct((bc, 1), x.dtype),
        grid=grid,
        # TODO(synk): optionally sweep pipeline_mode=pl.Buffered(3) on the
        # input spec if double-buffered DMA issue latency is not fully hidden.
        in_specs=[pl.BlockSpec((tile, lw), lambda i: (i, 0))],
        out_specs=pl.BlockSpec((tile, 1), lambda i: (i, 0)),
        compiler_params=pltpu.CompilerParams(
            dimension_semantics=("parallel",),
        ),
        cost_estimate=cost,
    )(x2d)

    # (B*C, 1) -> original leading shape (e.g. (B, C)); scalar-safe for ndim==2.
    return out2d.reshape(lead_shape)


if __name__ == "__main__":
    k0, k1, k2 = jax.random.split(jax.random.PRNGKey(0), 3)

    # Primary shape consistent with the module: NCHW, batch=2, channels=4, 16x16.
    B, C, H, W = 2, 4, 16, 16
    x = jax.random.normal(k0, (B, C, H, W), dtype=jnp.float32)
    out = jax.block_until_ready(tempnn_forward(x))
    ref = x[..., 0, 0]
    assert out.shape == ref.shape == (B, C)
    assert out.dtype == ref.dtype
    assert jnp.array_equal(out, ref)

    # Multi-step grid path (H*W < 128 -> full-extent lane read; grid of 2 steps).
    x2 = jax.random.normal(k1, (4, 12, 8, 8), dtype=jnp.float32)
    out2 = jax.block_until_ready(tempnn_forward(x2))
    assert jnp.array_equal(out2, x2[..., 0, 0])

    # Sub-32-bit dtype path (bf16, B*C not a multiple of the 16-row packing).
    x3 = jax.random.normal(k2, (2, 5, 16, 16), dtype=jnp.bfloat16)
    out3 = jax.block_until_ready(tempnn_forward(x3))
    assert jnp.array_equal(out3, x3[..., 0, 0])

    print("KERNEL_OK")
</pallas_src>

<mosaic_0001>
module attributes {stable_mosaic.version = 11 : i64} {
  func.func @_select00_kernel(%arg0: i32, %arg1: memref<8x128xf32, #tpu.memory_space<vmem>>, %arg2: memref<8x1xf32, #tpu.memory_space<vmem>>) attributes {dimension_semantics = [#tpu.dimension_semantics<parallel>], iteration_bounds = array<i64: 1>, scalar_prefetch = 0 : i64, scratch_operands = 0 : i64, tpu.core_type = #tpu.core_type<tc>, window_params = [{transform_indices = @transform_0, window_bounds = array<i64: 8, 128>}, {transform_indices = @transform_1, window_bounds = array<i64: 8, 1>}]} {
    %c0 = arith.constant 0 : index
    %c0_0 = arith.constant 0 : index
    %0 = vector.load %arg1[%c0, %c0_0] : memref<8x128xf32, #tpu.memory_space<vmem>>, vector<8x1xf32>
    %c0_1 = arith.constant 0 : index
    %c0_2 = arith.constant 0 : index
    %1 = vector.load %arg2[%c0_1, %c0_2] : memref<8x1xf32, #tpu.memory_space<vmem>>, vector<8x1xf32>
    tpu.vector_store %arg2[%c0_1, %c0_2], %0 {strides = array<i32>} : memref<8x1xf32, #tpu.memory_space<vmem>>, vector<8x1xf32>,
    return
  }
  func.func @transform_0(%arg0: i32) -> (i32, i32) {
    %c0_i32 = arith.constant 0 : i32
    %c0_i32_0 = arith.constant 0 : i32
    return %arg0, %c0_i32 : i32, i32
  }
  func.func @transform_1(%arg0: i32) -> (i32, i32) {
    %c0_i32 = arith.constant 0 : i32
    %c0_i32_0 = arith.constant 0 : i32
    return %arg0, %c0_i32 : i32, i32
  }
}

</mosaic_0001>

<llo_original>
// kernel: tpu_custom_call.1
$region0: #{tpu_custom_call.1}
  #allocation0 [shape = 'u32[]', space=smem, size = 0x4, offset = 0x4, fixed_abs, tag = 'smem constant byte address 0x4 - core index']
  #allocation1 [shape = 'u32[144,128]{1,0:T(1,128)}', space=vmem, size = 0x12000, scoped, tag = 'internal scratch']
  %s0 = inlined_call_operand.hbm [shape: f32[8,256], index: 0, kind: input, shape index: {}]
  %s1 = inlined_call_operand.vmem [shape: f32[8,1], index: 1, kind: output, shape index: {}]
  %s2 = sld [smem:[#allocation0]]
  $region18: #{tpu_custom_call.1} parent=0
    _
  %s4 = ssub.s32 1, %s2
  %s5 = scalar_select 0, %s4, %s2
  $region1: #{tpu_custom_call.1} parent=0
    #allocation2 [shape = 'u8[4096]{0}', space=vmem, size = 0x1000, scoped, tag = 'input window, operand 0, single buffered']
    #allocation3 [shape = 's32[1]{0}', space=sflag, size = 0x4, scoped, tag = 'scoped memory for tpu_custom_call.1']
    %6 = vsyncpa [#allocation3], 0
    // Predicated region
    $region2: #{tpu_custom_call.1} parent=1 // pred_check
      _
    $region3: #{tpu_custom_call.1} parent=1 // pred_check_branch
      %8 = sbr.rel (0) target = $region5
    $region4: #{tpu_custom_call.1} parent=1 // pred_region
      %s10 = ssub.s32 128, 128
      %11 = vsyncadd [#allocation3], %s10
      %s13 = sshll.u32 [#allocation2], 4
      %s14 = int_to_ptr.vmem [resolvable:$true] %s13
      %16 = dma.hbm_to_vmem [thread:$0]  %s0, 128, %s14, [#allocation3]
    $region5: #{tpu_custom_call.1} parent=1 // pred_fallthru
      _
    // Predicated region
    $region6: #{tpu_custom_call.1} parent=1 // pred_check
      _
    $region7: #{tpu_custom_call.1} parent=1 // pred_check_branch
      %18 = sbr.rel (0) target = $region9
    $region8: #{tpu_custom_call.1} parent=1 // pred_region
      %19 = dma.done [#allocation3], 128
    $region9: #{tpu_custom_call.1} parent=1 // pred_fallthru
      _
    %v20 = vld [vmem:[#allocation2] sm:$0xff]
    %vm21 = vcmask 7168
    %22 = vst.msk [vmem:[%s1] sm:$0xff] %vm21, %v20
    // Predicated region
    $region10: #{tpu_custom_call.1} parent=1 // pred_check
      _
    $region11: #{tpu_custom_call.1} parent=1 // pred_check_branch
      %24 = sbr.rel (0) target = $region13
    $region12: #{tpu_custom_call.1} parent=1 // pred_region
      _
    $region13: #{tpu_custom_call.1} parent=1 // pred_fallthru
      _
    // Predicated region
    $region14: #{tpu_custom_call.1} parent=1 // pred_check
      _
    $region15: #{tpu_custom_call.1} parent=1 // pred_check_branch
      %26 = sbr.rel (0) target = $region17
    $region16: #{tpu_custom_call.1} parent=1 // pred_region
      _
    $region17: #{tpu_custom_call.1} parent=1 // pred_fallthru
      _
    %27 = vsyncpa [#allocation3], 1

</llo_original>
